<compile_context>
chip_gen: v6e
topology: v6e:2x2x1
jax: 0.10.0
libtpu: 0.0.40
codegen_flags: <defaults>
</compile_context>

<pallas_src>
import jax
import jax.numpy as jnp
from jax import lax
from jax.experimental import pallas as pl
from jax.experimental.pallas import tpu as pltpu


# ---------------------------- Pallas kernels ----------------------------

def _proj_kernel(w_ref, x_ref, o_ref):
    # Fused phi/theta/g 1x1 convs: o[b, :, tile] = W_all @ x[b, :, tile] (bf16 MXU).
    o_ref[0] = jnp.dot(w_ref[...], x_ref[0].astype(jnp.bfloat16),
                       preferred_element_type=jnp.float32).astype(o_ref.dtype)


def _attn_mask_kernel(theta_ref, phi_ref, g_ref, w2_ref, x_ref, o_ref, acc_ref):
    j = pl.program_id(1)
    nj = pl.num_programs(1)

    @pl.when(j == 0)
    def _init():
        acc_ref[...] = jnp.zeros_like(acc_ref)

    theta = theta_ref[0, 0]        # (c, n)  bf16, resident per batch
    phi = phi_ref[0, 0]            # (c, tn) bf16, current column block
    g = g_ref[0, 0]                # (c, tn) bf16, current column block

    # s[i, jj] = sum_k theta[k, i] * phi[k, jj]   (theta^T @ phi column block)
    s = lax.dot_general(theta, phi, (((0,), (0,)), ((), ())),
                        preferred_element_type=jnp.float32)        # (n, tn) f32

    # PyTorch softmax(dim=1) == per-column softmax over the full i axis; the
    # full i axis is resident in this column block, so it is exact (no online
    # stats / no full (n, n) materialization).
    m = jnp.max(s, axis=0, keepdims=True)                          # (1, tn)
    e = jnp.exp(s - m)                                             # (n, tn) f32
    denom = jnp.sum(e, axis=0, keepdims=True)                      # (1, tn)
    inv = pl.reciprocal(denom)                                     # exact, EUP

    # Fold 1/denom into g (c*tn mults) and accumulate y[:, i] over column blocks.
    g_scaled = (g * inv).astype(jnp.bfloat16)                      # (c, tn)
    acc_ref[...] += lax.dot_general(g_scaled, e.astype(jnp.bfloat16),
                                    (((1,), (1,)), ((), ())),
                                    preferred_element_type=jnp.float32)   # (c, n)

    # Epilogue (once per batch): conv_mask (interleaved weights) + residual.
    @pl.when(j == nj - 1)
    def _epilogue():
        n = acc_ref.shape[1]
        y = acc_ref[...].astype(jnp.bfloat16)                      # (c, n)
        # PyTorch permute+view maps y_flat[m, p] = y[2m + p//n, p % n];
        # w2[r] is conv_mask scattered onto columns 2m + r, so the mask conv
        # applies directly to y in (c, n) layout, one matmul per spatial half.
        mask0 = jnp.dot(w2_ref[0], y, preferred_element_type=jnp.float32)  # (c, n)
        mask1 = jnp.dot(w2_ref[1], y, preferred_element_type=jnp.float32)  # (c, n)
        o_ref[0, :, :n] = (mask0 + x_ref[0, :, :n]).astype(o_ref.dtype)
        o_ref[0, :, n:] = (mask1 + x_ref[0, :, n:]).astype(o_ref.dtype)


# ---------------------------- pallas_call wrappers ----------------------------

def _pick_lane_tile(dim, max_tile=2048, min_tile=512):
    """Largest 128-multiple divisor of `dim` in [min_tile, max_tile]; else full dim."""
    if dim <= max_tile or dim % 128 != 0:
        # TODO(synk): pad ragged dims to a multiple of 128 (masked tail) instead
        # of falling back to one full-extent block.
        return dim
    for t in range(max_tile, min_tile - 1, -128):
        if dim % t == 0:
            return t
    return dim


def _fused_projection(w_all_bf16, x_flat, tile_hw):
    b, c, hw = x_flat.shape
    c3 = w_all_bf16.shape[0]
    cost = pl.CostEstimate(
        flops=2 * b * c3 * c * hw,
        transcendentals=0,
        bytes_accessed=b * c * hw * 4 + b * c3 * hw * 2 + c3 * c * 2)
    return pl.pallas_call(
        _proj_kernel,
        out_shape=jax.ShapeDtypeStruct((b, c3, hw), jnp.bfloat16),
        grid=(b, hw // tile_hw),
        in_specs=[
            pl.BlockSpec((c3, c), lambda i, j: (0, 0)),              # weight resident
            pl.BlockSpec((1, c, tile_hw), lambda i, j: (i, 0, j)),
        ],
        out_specs=pl.BlockSpec((1, c3, tile_hw), lambda i, j: (i, 0, j)),
        compiler_params=pltpu.CompilerParams(
            dimension_semantics=("parallel", "parallel")),
        cost_estimate=cost,
    )(w_all_bf16, x_flat)


def _attention_mask_residual(proj_r, w2_bf16, x_flat, tile_n):
    b, _, c, n = proj_r.shape
    hw = x_flat.shape[2]
    nj = n // tile_n
    cost = pl.CostEstimate(
        flops=b * (4 * c * n * n + 4 * c * c * n),
        transcendentals=b * n * n,
        bytes_accessed=b * (3 * c * n * 2 + 2 * c * hw * 4) + 2 * c * c * 2)
    return pl.pallas_call(
        _attn_mask_kernel,
        out_shape=jax.ShapeDtypeStruct((b, c, hw), x_flat.dtype),
        grid=(b, nj),
        in_specs=[
            pl.BlockSpec((1, 1, c, n), lambda i, j: (i, 1, 0, 0)),       # theta (resident/batch)
            pl.BlockSpec((1, 1, c, tile_n), lambda i, j: (i, 0, 0, j)),  # phi column block
            pl.BlockSpec((1, 1, c, tile_n), lambda i, j: (i, 2, 0, j)),  # g column block
            pl.BlockSpec((2, c, c), lambda i, j: (0, 0, 0)),             # mask weights resident
            pl.BlockSpec((1, c, hw), lambda i, j: (i, 0, 0)),            # x (resident/batch)
        ],
        out_specs=pl.BlockSpec((1, c, hw), lambda i, j: (i, 0, 0)),
        scratch_shapes=[pltpu.VMEM((c, n), jnp.float32)],
        compiler_params=pltpu.CompilerParams(
            dimension_semantics=("parallel", "arbitrary"),
            vmem_limit_bytes=48 * 1024 * 1024),
        cost_estimate=cost,
    )(proj_r, proj_r, proj_r, w2_bf16, x_flat)


# ---------------------------- forward pass ----------------------------

def non_local_block(x, w_phi, w_theta, w_g, w_mask):
    """NonLocalBlock forward. x: (b, c, h, w) NCHW; 1x1 conv weights as (out, in)."""
    b, c, h, w = x.shape
    inter = c // 2
    assert inter * 2 == c, "channel must be even (inter_channel = channel // 2)"
    hw = h * w
    n = (inter * hw) // c          # PyTorch .view(b, c, -1) on a (b, inter, h, w) tensor
    assert inter * hw == c * n, "h*w must be even for PyTorch's .view(b, c, -1)"

    x_flat = x.reshape(b, c, hw)

    # fused phi/theta/g 1x1 convs: read x once, bf16 weights + bf16 intermediate.
    tile_hw = _pick_lane_tile(hw)
    assert hw % tile_hw == 0
    w_all = jnp.concatenate([w_phi, w_theta, w_g], axis=0).astype(jnp.bfloat16)
    proj = _fused_projection(w_all, x_flat, tile_hw)                # (b, 3*inter, hw) bf16

    # PyTorch's quirky .view(b, c, -1) per projection -> pure row-major reshape.
    proj_r = proj.reshape(b, 3, c, n)                               # [:,0]=phi [:,1]=theta [:,2]=g

    # conv_mask weights interleaved so the mask conv applies directly in (c, n)
    # layout: y_flat[m, r*n + j] == y_cn[2m + r, j].
    w2 = jnp.zeros((2, c, c), w_mask.dtype)
    w2 = w2.at[0, :, 0::2].set(w_mask)
    w2 = w2.at[1, :, 1::2].set(w_mask)
    w2 = w2.astype(jnp.bfloat16)

    # column-tiled attention + fused mask conv + residual (no (n,n) or y in HBM).
    tile_n = _pick_lane_tile(n, max_tile=1024, min_tile=256)
    assert n % tile_n == 0
    out = _attention_mask_residual(proj_r, w2, x_flat, tile_n)      # (b, c, hw)
    return out.reshape(b, c, h, w)


# ---------------------------- pure-JAX reference ----------------------------

def _reference(x, w_phi, w_theta, w_g, w_mask):
    b, c, h, w = x.shape
    inter = c // 2
    hw = h * w
    x_flat = x.reshape(b, c, hw)
    phi = jnp.einsum('oc,bcn->bon', w_phi, x_flat).reshape(b, c, -1)
    theta = jnp.einsum('oc,bcn->bon', w_theta, x_flat).reshape(b, c, -1).transpose(0, 2, 1)
    g = jnp.einsum('oc,bcn->bon', w_g, x_flat).reshape(b, c, -1).transpose(0, 2, 1)
    s = jnp.einsum('bnc,bcm->bnm', theta, phi)
    s = jax.nn.softmax(s, axis=1)
    y = jnp.einsum('bnm,bmc->bnc', s, g)
    y = y.transpose(0, 2, 1).reshape(b, inter, h, w)
    mask = jnp.einsum('oc,bchw->bohw', w_mask, y)
    return mask + x


if __name__ == "__main__":
    key = jax.random.PRNGKey(0)
    k1, k2, k3, k4, k5 = jax.random.split(key, 5)

    b, c, h, w = 2, 4, 16, 16
    inter = c // 2

    x = jax.random.normal(k1, (b, c, h, w), dtype=jnp.float32)
    # nn.Conv2d weights are (out, in, 1, 1) with bias=False; stored as (out, in).
    w_phi = jax.random.normal(k2, (inter, c), dtype=jnp.float32) * 0.3
    w_theta = jax.random.normal(k3, (inter, c), dtype=jnp.float32) * 0.3
    w_g = jax.random.normal(k4, (inter, c), dtype=jnp.float32) * 0.3
    w_mask = jax.random.normal(k5, (c, inter), dtype=jnp.float32) * 0.3

    fwd = jax.jit(non_local_block)
    out = jax.block_until_ready(fwd(x, w_phi, w_theta, w_g, w_mask))

    ref = _reference(x, w_phi, w_theta, w_g, w_mask)
    assert out.shape == (b, c, h, w)
    max_err = float(jnp.max(jnp.abs(out.astype(jnp.float32) - ref)))
    # bf16 MXU operands and the bf16 projection intermediate loosen the
    # tolerance vs the pure-f32 reference (softmax itself runs in f32).
    assert jnp.allclose(out, ref, atol=5e-2, rtol=5e-2), max_err

    print("KERNEL_OK")
</pallas_src>

<mosaic_0001>
module attributes {stable_mosaic.version = 11 : i64} {
  func.func @_proj_kernel(%arg0: i32, %arg1: i32, %arg2: memref<6x4xbf16, #tpu.memory_space<vmem>>, %arg3: memref<1x4x256xf32, #tpu.memory_space<vmem>>, %arg4: memref<1x6x256xbf16, #tpu.memory_space<vmem>>) attributes {dimension_semantics = [#tpu.dimension_semantics<parallel>, #tpu.dimension_semantics<parallel>], iteration_bounds = array<i64: 2, 1>, scalar_prefetch = 0 : i64, scratch_operands = 0 : i64, tpu.core_type = #tpu.core_type<tc>, window_params = [{pipeline_mode = #tpu.pipeline_mode<synchronous>, transform_indices = @transform_0, window_bounds = array<i64: 6, 4>}, {transform_indices = @transform_1, window_bounds = array<i64: 1, 4, 256>}, {transform_indices = @transform_2, window_bounds = array<i64: 1, 6, 256>}]} {
    %c0 = arith.constant 0 : index
    %c0_0 = arith.constant 0 : index
    %0 = vector.load %arg2[%c0, %c0_0] : memref<6x4xbf16, #tpu.memory_space<vmem>>, vector<6x4xbf16>
    %c0_1 = arith.constant 0 : index
    %c0_2 = arith.constant 0 : index
    %c0_3 = arith.constant 0 : index
    %1 = vector.load %arg3[%c0_1, %c0_2, %c0_3] : memref<1x4x256xf32, #tpu.memory_space<vmem>>, vector<1x4x256xf32>
    %2 = vector.shape_cast %1 : vector<1x4x256xf32> to vector<4x256xf32>
    %3 = arith.truncf %2 : vector<4x256xf32> to vector<4x256xbf16>
    %cst = arith.constant dense<0.000000e+00> : vector<6x256xf32>
    %4 = tpu.matmul %0, %3, %cst {dimension_numbers = #tpu.dot_dimension_numbers<[1], [0], [0], [1], [0, 0, 1, 1], [], []>} : vector<6x4xbf16>, vector<4x256xbf16>, vector<6x256xf32> -> vector<6x256xf32>
    %5 = arith.truncf %4 : vector<6x256xf32> to vector<6x256xbf16>
    %c0_4 = arith.constant 0 : index
    %c0_5 = arith.constant 0 : index
    %c0_6 = arith.constant 0 : index
    %6 = vector.load %arg4[%c0_4, %c0_5, %c0_6] : memref<1x6x256xbf16, #tpu.memory_space<vmem>>, vector<1x6x256xbf16>
    %7 = vector.shape_cast %6 : vector<1x6x256xbf16> to vector<6x256xbf16>
    %8 = vector.shape_cast %5 : vector<6x256xbf16> to vector<1x6x256xbf16>
    tpu.vector_store %arg4[%c0_4, %c0_5, %c0_6], %8 {strides = array<i32>} : memref<1x6x256xbf16, #tpu.memory_space<vmem>>, vector<1x6x256xbf16>,
    return
  }
  func.func @transform_0(%arg0: i32, %arg1: i32) -> (i32, i32) {
    %c0_i32 = arith.constant 0 : i32
    %c0_i32_0 = arith.constant 0 : i32
    %c0_i32_1 = arith.constant 0 : i32
    return %c0_i32, %c0_i32_0 : i32, i32
  }
  func.func @transform_1(%arg0: i32, %arg1: i32) -> (i32, i32, i32) {
    %c0_i32 = arith.constant 0 : i32
    %c0_i32_0 = arith.constant 0 : i32
    return %arg0, %c0_i32, %arg1 : i32, i32, i32
  }
  func.func @transform_2(%arg0: i32, %arg1: i32) -> (i32, i32, i32) {
    %c0_i32 = arith.constant 0 : i32
    %c0_i32_0 = arith.constant 0 : i32
    return %arg0, %c0_i32, %arg1 : i32, i32, i32
  }
}

module attributes {stable_mosaic.version = 11 : i64} {
  func.func @_attn_mask_kernel(%arg0: i32, %arg1: i32, %arg2: memref<1x1x4x128xbf16, #tpu.memory_space<vmem>>, %arg3: memref<1x1x4x128xbf16, #tpu.memory_space<vmem>>, %arg4: memref<1x1x4x128xbf16, #tpu.memory_space<vmem>>, %arg5: memref<2x4x4xbf16, #tpu.memory_space<vmem>>, %arg6: memref<1x4x256xf32, #tpu.memory_space<vmem>>, %arg7: memref<1x4x256xf32, #tpu.memory_space<vmem>>, %arg8: memref<4x128xf32, #tpu.memory_space<vmem>>) attributes {dimension_semantics = [#tpu.dimension_semantics<parallel>, #tpu.dimension_semantics<arbitrary>], iteration_bounds = array<i64: 2, 1>, scalar_prefetch = 0 : i64, scratch_operands = 1 : i64, tpu.core_type = #tpu.core_type<tc>, window_params = [{transform_indices = @transform_0, window_bounds = array<i64: 1, 1, 4, 128>}, {transform_indices = @transform_1, window_bounds = array<i64: 1, 1, 4, 128>}, {transform_indices = @transform_2, window_bounds = array<i64: 1, 1, 4, 128>}, {pipeline_mode = #tpu.pipeline_mode<synchronous>, transform_indices = @transform_3, window_bounds = array<i64: 2, 4, 4>}, {transform_indices = @transform_4, window_bounds = array<i64: 1, 4, 256>}, {transform_indices = @transform_5, window_bounds = array<i64: 1, 4, 256>}]} {
    %c0_i32 = arith.constant 0 : i32
    %0 = arith.cmpi eq, %arg1, %c0_i32 : i32
    %1 = arith.extui %0 : i1 to i32
    %c0_i32_0 = arith.constant 0 : i32
    %2 = arith.cmpi ne, %1, %c0_i32_0 : i32
    scf.if %2 {
      %cst_21 = arith.constant 0.000000e+00 : f32
      %30 = vector.broadcast %cst_21 : f32 to vector<4x128xf32>
      %c0_22 = arith.constant 0 : index
      %c0_23 = arith.constant 0 : index
      %31 = vector.load %arg8[%c0_22, %c0_23] : memref<4x128xf32, #tpu.memory_space<vmem>>, vector<4x128xf32>
      tpu.vector_store %arg8[%c0_22, %c0_23], %30 {strides = array<i32>} : memref<4x128xf32, #tpu.memory_space<vmem>>, vector<4x128xf32>,
    } else {
    }
    %c0 = arith.constant 0 : index
    %c0_1 = arith.constant 0 : index
    %c0_2 = arith.constant 0 : index
    %c0_3 = arith.constant 0 : index
    %3 = vector.load %arg2[%c0, %c0_1, %c0_2, %c0_3] : memref<1x1x4x128xbf16, #tpu.memory_space<vmem>>, vector<1x1x4x128xbf16>
    %4 = vector.shape_cast %3 : vector<1x1x4x128xbf16> to vector<4x128xbf16>
    %c0_4 = arith.constant 0 : index
    %c0_5 = arith.constant 0 : index
    %c0_6 = arith.constant 0 : index
    %c0_7 = arith.constant 0 : index
    %5 = vector.load %arg3[%c0_4, %c0_5, %c0_6, %c0_7] : memref<1x1x4x128xbf16, #tpu.memory_space<vmem>>, vector<1x1x4x128xbf16>
    %6 = vector.shape_cast %5 : vector<1x1x4x128xbf16> to vector<4x128xbf16>
    %c0_8 = arith.constant 0 : index
    %c0_9 = arith.constant 0 : index
    %c0_10 = arith.constant 0 : index
    %c0_11 = arith.constant 0 : index
    %7 = vector.load %arg4[%c0_8, %c0_9, %c0_10, %c0_11] : memref<1x1x4x128xbf16, #tpu.memory_space<vmem>>, vector<1x1x4x128xbf16>
    %8 = vector.shape_cast %7 : vector<1x1x4x128xbf16> to vector<4x128xbf16>
    %cst = arith.constant dense<0.000000e+00> : vector<128x128xf32>
    %9 = tpu.matmul %4, %6, %cst {dimension_numbers = #tpu.dot_dimension_numbers<[0], [0], [1], [1], [0, 1, 1, 1], [], []>} : vector<4x128xbf16>, vector<4x128xbf16>, vector<128x128xf32> -> vector<128x128xf32>
    %cst_12 = arith.constant dense<0xFF800000> : vector<128xf32>
    %10 = vector.multi_reduction <maximumf>, %9, %cst_12 [0] : vector<128x128xf32> to vector<128xf32>
    %11 = vector.shape_cast %10 : vector<128xf32> to vector<1x128xf32>
    %12 = vector.broadcast %11 : vector<1x128xf32> to vector<128x128xf32>
    %13 = arith.subf %9, %12 : vector<128x128xf32>
    %14 = math.exp %13 : vector<128x128xf32>
    %cst_13 = arith.constant dense<0.000000e+00> : vector<128xf32>
    %15 = vector.multi_reduction <add>, %14, %cst_13 [0] : vector<128x128xf32> to vector<128xf32>
    %16 = vector.shape_cast %15 : vector<128xf32> to vector<1x128xf32>
    %17 = tpu.reciprocal %16 : vector<1x128xf32> -> vector<1x128xf32>
    %18 = arith.extf %8 : vector<4x128xbf16> to vector<4x128xf32>
    %19 = vector.broadcast %17 : vector<1x128xf32> to vector<4x128xf32>
    %20 = arith.mulf %18, %19 : vector<4x128xf32>
    %21 = arith.truncf %20 : vector<4x128xf32> to vector<4x128xbf16>
    %c0_14 = arith.constant 0 : index
    %c0_15 = arith.constant 0 : index
    %22 = vector.load %arg8[%c0_14, %c0_15] : memref<4x128xf32, #tpu.memory_space<vmem>>, vector<4x128xf32>
    %23 = arith.truncf %14 : vector<128x128xf32> to vector<128x128xbf16>
    %cst_16 = arith.constant dense<0.000000e+00> : vector<4x128xf32>
    %24 = tpu.matmul %21, %23, %cst_16 {dimension_numbers = #tpu.dot_dimension_numbers<[1], [1], [0], [0], [0, 0, 1, 0], [], []>} : vector<4x128xbf16>, vector<128x128xbf16>, vector<4x128xf32> -> vector<4x128xf32>
    %25 = arith.addf %22, %24 : vector<4x128xf32>
    %c0_17 = arith.constant 0 : index
    %c0_18 = arith.constant 0 : index
    %26 = vector.load %arg8[%c0_17, %c0_18] : memref<4x128xf32, #tpu.memory_space<vmem>>, vector<4x128xf32>
    tpu.vector_store %arg8[%c0_17, %c0_18], %25 {strides = array<i32>} : memref<4x128xf32, #tpu.memory_space<vmem>>, vector<4x128xf32>,
    %c0_i32_19 = arith.constant 0 : i32
    %27 = arith.cmpi eq, %arg1, %c0_i32_19 : i32
    %28 = arith.extui %27 : i1 to i32
    %c0_i32_20 = arith.constant 0 : i32
    %29 = arith.cmpi ne, %28, %c0_i32_20 : i32
    scf.if %29 {
      %c0_21 = arith.constant 0 : index
      %c0_22 = arith.constant 0 : index
      %30 = vector.load %arg8[%c0_21, %c0_22] : memref<4x128xf32, #tpu.memory_space<vmem>>, vector<4x128xf32>
      %31 = arith.truncf %30 : vector<4x128xf32> to vector<4x128xbf16>
      %c0_23 = arith.constant 0 : index
      %c0_24 = arith.constant 0 : index
      %c0_25 = arith.constant 0 : index
      %32 = vector.load %arg5[%c0_23, %c0_24, %c0_25] : memref<2x4x4xbf16, #tpu.memory_space<vmem>>, vector<1x4x4xbf16>
      %33 = vector.shape_cast %32 : vector<1x4x4xbf16> to vector<4x4xbf16>
      %cst_26 = arith.constant dense<0.000000e+00> : vector<4x128xf32>
      %34 = tpu.matmul %33, %31, %cst_26 {dimension_numbers = #tpu.dot_dimension_numbers<[1], [0], [0], [1], [0, 0, 1, 1], [], []>} : vector<4x4xbf16>, vector<4x128xbf16>, vector<4x128xf32> -> vector<4x128xf32>
      %c1 = arith.constant 1 : index
      %c0_27 = arith.constant 0 : index
      %c0_28 = arith.constant 0 : index
      %35 = vector.load %arg5[%c1, %c0_27, %c0_28] : memref<2x4x4xbf16, #tpu.memory_space<vmem>>, vector<1x4x4xbf16>
      %36 = vector.shape_cast %35 : vector<1x4x4xbf16> to vector<4x4xbf16>
      %cst_29 = arith.constant dense<0.000000e+00> : vector<4x128xf32>
      %37 = tpu.matmul %36, %31, %cst_29 {dimension_numbers = #tpu.dot_dimension_numbers<[1], [0], [0], [1], [0, 0, 1, 1], [], []>} : vector<4x4xbf16>, vector<4x128xbf16>, vector<4x128xf32> -> vector<4x128xf32>
      %c0_30 = arith.constant 0 : index
      %c0_31 = arith.constant 0 : index
      %c0_32 = arith.constant 0 : index
      %38 = vector.load %arg6[%c0_30, %c0_31, %c0_32] : memref<1x4x256xf32, #tpu.memory_space<vmem>>, vector<1x4x128xf32>
      %39 = vector.shape_cast %38 : vector<1x4x128xf32> to vector<4x128xf32>
      %40 = arith.addf %34, %39 : vector<4x128xf32>
      %c0_33 = arith.constant 0 : index
      %c0_34 = arith.constant 0 : index
      %c0_35 = arith.constant 0 : index
      %41 = vector.load %arg7[%c0_33, %c0_34, %c0_35] : memref<1x4x256xf32, #tpu.memory_space<vmem>>, vector<1x4x128xf32>
      %42 = vector.shape_cast %41 : vector<1x4x128xf32> to vector<4x128xf32>
      %43 = vector.shape_cast %40 : vector<4x128xf32> to vector<1x4x128xf32>
      tpu.vector_store %arg7[%c0_33, %c0_34, %c0_35], %43 {strides = array<i32>} : memref<1x4x256xf32, #tpu.memory_space<vmem>>, vector<1x4x128xf32>,
      %c0_36 = arith.constant 0 : index
      %c0_37 = arith.constant 0 : index
      %c128 = arith.constant 128 : index
      %44 = vector.load %arg6[%c0_36, %c0_37, %c128] : memref<1x4x256xf32, #tpu.memory_space<vmem>>, vector<1x4x128xf32>
      %45 = vector.shape_cast %44 : vector<1x4x128xf32> to vector<4x128xf32>
      %46 = arith.addf %37, %45 : vector<4x128xf32>
      %c0_38 = arith.constant 0 : index
      %c0_39 = arith.constant 0 : index
      %c128_40 = arith.constant 128 : index
      %47 = vector.load %arg7[%c0_38, %c0_39, %c128_40] : memref<1x4x256xf32, #tpu.memory_space<vmem>>, vector<1x4x128xf32>
      %48 = vector.shape_cast %47 : vector<1x4x128xf32> to vector<4x128xf32>
      %49 = vector.shape_cast %46 : vector<4x128xf32> to vector<1x4x128xf32>
      tpu.vector_store %arg7[%c0_38, %c0_39, %c128_40], %49 {strides = array<i32>} : memref<1x4x256xf32, #tpu.memory_space<vmem>>, vector<1x4x128xf32>,
    } else {
    }
    return
  }
  func.func @transform_0(%arg0: i32, %arg1: i32) -> (i32, i32, i32, i32) {
    %c1_i32 = arith.constant 1 : i32
    %c0_i32 = arith.constant 0 : i32
    %c0_i32_0 = arith.constant 0 : i32
    %c0_i32_1 = arith.constant 0 : i32
    return %arg0, %c1_i32, %c0_i32, %c0_i32_0 : i32, i32, i32, i32
  }
  func.func @transform_1(%arg0: i32, %arg1: i32) -> (i32, i32, i32, i32) {
    %c0_i32 = arith.constant 0 : i32
    %c0_i32_0 = arith.constant 0 : i32
    %c0_i32_1 = arith.constant 0 : i32
    return %arg0, %c0_i32, %c0_i32_0, %arg1 : i32, i32, i32, i32
  }
  func.func @transform_2(%arg0: i32, %arg1: i32) -> (i32, i32, i32, i32) {
    %c2_i32 = arith.constant 2 : i32
    %c0_i32 = arith.constant 0 : i32
    %c0_i32_0 = arith.constant 0 : i32
    return %arg0, %c2_i32, %c0_i32, %arg1 : i32, i32, i32, i32
  }
  func.func @transform_3(%arg0: i32, %arg1: i32) -> (i32, i32, i32) {
    %c0_i32 = arith.constant 0 : i32
    %c0_i32_0 = arith.constant 0 : i32
    %c0_i32_1 = arith.constant 0 : i32
    %c0_i32_2 = arith.constant 0 : i32
    return %c0_i32, %c0_i32_0, %c0_i32_1 : i32, i32, i32
  }
  func.func @transform_4(%arg0: i32, %arg1: i32) -> (i32, i32, i32) {
    %c0_i32 = arith.constant 0 : i32
    %c0_i32_0 = arith.constant 0 : i32
    %c0_i32_1 = arith.constant 0 : i32
    return %arg0, %c0_i32, %c0_i32_0 : i32, i32, i32
  }
  func.func @transform_5(%arg0: i32, %arg1: i32) -> (i32, i32, i32) {
    %c0_i32 = arith.constant 0 : i32
    %c0_i32_0 = arith.constant 0 : i32
    %c0_i32_1 = arith.constant 0 : i32
    return %arg0, %c0_i32, %c0_i32_0 : i32, i32, i32
  }
}

</mosaic_0001>

<llo_original>
// kernel: non_local_block.2
$region0: #{non_local_block.2}
  #allocation0 [shape = 'u32[]', space=smem, size = 0x4, offset = 0x4, fixed_abs, tag = 'smem constant byte address 0x4 - core index']
  #allocation1 [shape = 'u32[144,128]{1,0:T(1,128)}', space=vmem, size = 0x12000, scoped, tag = 'internal scratch']
  %s0 = inlined_call_operand.vmem [shape: bf16[6,4], index: 0, kind: input, shape index: {}]
  %s1 = inlined_call_operand.vmem [shape: f32[2,4,256], index: 1, kind: input, shape index: {}]
  %s2 = inlined_call_operand.vmem [shape: bf16[2,6,256], index: 2, kind: output, shape index: {}]
  %s3 = sld [smem:[#allocation0]]
  $region41: #{non_local_block.2} parent=0
    _
  %s5 = ssub.s32 1, %s3
  %s6 = scalar_select 0, %s5, %s3
  loop: start=0, step=1, limit=4
  $region2: #{non_local_block.2} parent=0 // loop_pre_header
    _
  $region3: #{non_local_block.2} parent=0 // loop_header
    %s8 = sphi 0, %s12
    %p9 = scmp.ge.s32.totalorder %s8, 4
    %s15 = sphi 0, %s27
    %s16 = sphi 0, %s23
    %s17 = sphi 0, %s15
    %s18 = sphi 0, %s16
    %s19 = sphi 0, %s17
    %s20 = sphi 0, %s18
    %s28 = sphi 0, %s28
    %s30 = sphi 0, %s28
    %s31 = sphi 0, %s30
    %s45 = sphi 0, %s31
    %s53 = sphi 0, %s55
    %s56 = sphi 0, %s53
    %s57 = sphi 0, %s56
    %s73 = sphi 0, %s57
    %s81 = sphi 0, %s83
    %s84 = sphi 0, %s81
    %s85 = sphi 0, %s84
    %s101 = sphi 0, %s85
  $region4: #{non_local_block.2} parent=0 // loop_header_branch
    %11 = sbr.rel (%p9) target = $region8
  $region5: #{non_local_block.2} parent=0 // loop_body
    %s13 = ssub.s32 %s8, 1
    %s14 = ssub.s32 %s8, 2
    %s21 = sadd.s32 1, %s16
    %p22 = scmp.ge.s32.totalorder %s21, 1
    %s23 = scalar_select %p22, 0, %s21
    %s24 = sadd.s32 1, %s15
    %s25 = scalar_select %p22, %s24, %s15
    %p26 = scmp.ge.s32.totalorder %s25, 2
    %s27 = scalar_select %p26, 0, %s25
    %s29 = sadd.s32 %s28, 1
    %p32 = scmp.eq.s32.totalorder %s8, 1
    %p33 = scmp.ne.s32.totalorder %s28, %s30
    %p34 = scmp.eq.s32.totalorder %s8, 0
    %p35 = por %p33, %p34
    %p36 = scmp.ne.s32.totalorder %s28, %s30
    %p37 = scmp.eq.s32.totalorder %s13, 1
    %p38 = por %p36, %p37
    %p39 = scmp.ne.s32.totalorder %s30, %s31
    %p40 = scmp.eq.s32.totalorder %s13, 0
    %p41 = por %p39, %p40
    %p42 = scmp.ne.s32.totalorder %s30, %s31
    %p43 = scmp.eq.s32.totalorder %s14, 1
    %p44 = por %p42, %p43
    %p46 = scmp.ne.s32.totalorder %s31, %s45
    %p47 = scmp.eq.s32.totalorder %s14, 0
    %p48 = por %p46, %p47
    %s49 = ssub.s32 %s15, %s27
    %s50 = ssub.s32 %s16, %s23
    %s51 = sor.u32 %s49, %s50
    %p52 = scmp.eq.s32.totalorder %s51, 0
    %s54 = sadd.s32 %s53, 1
    %s55 = scalar_select %p52, %s53, %s54
    %p58 = pneg %p52
    %p59 = scmp.eq.s32.totalorder %s8, 1
    %p60 = por %p58, %p59
    %p61 = scmp.ne.s32.totalorder %s53, %s56
    %p62 = scmp.eq.s32.totalorder %s8, 0
    %p63 = por %p61, %p62
    %p64 = scmp.ne.s32.totalorder %s53, %s56
    %p65 = scmp.eq.s32.totalorder %s13, 1
    %p66 = por %p64, %p65
    %p67 = scmp.ne.s32.totalorder %s56, %s57
    %p68 = scmp.eq.s32.totalorder %s13, 0
    %p69 = por %p67, %p68
    %p70 = scmp.ne.s32.totalorder %s56, %s57
    %p71 = scmp.eq.s32.totalorder %s14, 1
    %p72 = por %p70, %p71
    %p74 = scmp.ne.s32.totalorder %s57, %s73
    %p75 = scmp.eq.s32.totalorder %s14, 0
    %p76 = por %p74, %p75
    %s77 = ssub.s32 %s15, %s27
    %s78 = ssub.s32 %s16, %s23
    %s79 = sor.u32 %s77, %s78
    %p80 = scmp.eq.s32.totalorder %s79, 0
    %s82 = sadd.s32 %s81, 1
    %s83 = scalar_select %p80, %s81, %s82
    %p86 = pneg %p80
    %p87 = scmp.eq.s32.totalorder %s8, 1
    %p88 = por %p86, %p87
    %p89 = scmp.ne.s32.totalorder %s81, %s84
    %p90 = scmp.eq.s32.totalorder %s8, 0
    %p91 = por %p89, %p90
    %p92 = scmp.ne.s32.totalorder %s81, %s84
    %p93 = scmp.eq.s32.totalorder %s13, 1
    %p94 = por %p92, %p93
    %p95 = scmp.ne.s32.totalorder %s84, %s85
    %p96 = scmp.eq.s32.totalorder %s13, 0
    %p97 = por %p95, %p96
    %p98 = scmp.ne.s32.totalorder %s84, %s85
    %p99 = scmp.eq.s32.totalorder %s14, 1
    %p100 = por %p98, %p99
    %p102 = scmp.ne.s32.totalorder %s85, %s101
    %p103 = scmp.eq.s32.totalorder %s14, 0
    %p104 = por %p102, %p103
    %p105 = scmp.le.s32.totalorder 1, %s8
    %p106 = scmp.lt.s32.totalorder %s8, 3
    %p107 = pnand %p105, %p106
    %p108 = pneg %p107
    // Predicated region
    $region9: #{non_local_block.2} parent=5 // pred_check
      _
    $region10: #{non_local_block.2} parent=5 // pred_check_branch
      %110 = sbr.rel (%p107) target = $region12
    $region11: #{non_local_block.2} parent=5 // pred_region
      %s111 = ssub.s32 %s8, 1
      // Predicated region
      $region13: #{non_local_block.2} parent=11 // pred_check
        %p112 = pneg %p41
      $region14: #{non_local_block.2} parent=11 // pred_check_branch
        %114 = sbr.rel (%p112) target = $region16
      $region15: #{non_local_block.2} parent=11 // pred_region
        _
      $region16: #{non_local_block.2} parent=11 // pred_fallthru
        _
    $region12: #{non_local_block.2} parent=5 // pred_fallthru
      _
    %p115 = scmp.lt.s32.totalorder %s8, 2
    // Predicated region
    $region17: #{non_local_block.2} parent=5 // pred_check
      %p116 = pneg %p115
    $region18: #{non_local_block.2} parent=5 // pred_check_branch
      %118 = sbr.rel (%p116) target = $region20
    $region19: #{non_local_block.2} parent=5 // pred_region
      // Predicated region
      $region21: #{non_local_block.2} parent=19 // pred_check
        %p119 = pneg %p63
      $region22: #{non_local_block.2} parent=19 // pred_check_branch
        %121 = sbr.rel (%p119) target = $region24
      $region23: #{non_local_block.2} parent=19 // pred_region
        %s122 = smul.u32 2, %s16
        %p123 = scmp.lt.s32.totalorder %s15, 1
        %s124 = scalar_select %p123, %s15, 1
        %p125 = scmp.lt.s32.totalorder %s122, 1
        %s126 = scalar_select %p125, %s122, 1
        %s127 = smul.addr %s124, 2
        %s128 = sadd.s32 %s126, %s127
        %s129 = smul.addr %s128, 4
        %s130 = scalar_lea.vmem %s1, %s129
        %s131 = smul.u32 2, %s16
      $region24: #{non_local_block.2} parent=19 // pred_fallthru
        _
    $region20: #{non_local_block.2} parent=5 // pred_fallthru
      _
    %p132 = scmp.le.s32.totalorder 1, %s8
    %p133 = scmp.lt.s32.totalorder %s8, 3
    %p134 = pnand %p132, %p133
    %p135 = pneg %p134
    // Predicated region
    $region25: #{non_local_block.2} parent=5 // pred_check
      _
    $region26: #{non_local_block.2} parent=5 // pred_check_branch
      %137 = sbr.rel (%p134) target = $region28
    $region27: #{non_local_block.2} parent=5 // pred_region
      %s138 = ssub.s32 %s8, 1
      %p139 = pneg %p41
      %p140 = pneg %p38
      %s141 = smul.u32 2, %s18
      %p142 = scmp.lt.s32.totalorder %s17, 1
      %s143 = scalar_select %p142, %s17, 1
      %p144 = scmp.lt.s32.totalorder %s141, 1
      %s145 = scalar_select %p144, %s141, 1
      %s146 = smul.addr %s143, 2
      %s147 = sadd.s32 %s145, %s146
      %s148 = smul.addr %s147, 4
      %s149 = scalar_lea.vmem %s1, %s148
      %p150 = pneg %p69
      %p151 = pneg %p66
      %p152 = pneg %p97
      %p153 = pneg %p94
      %s154 = smul.u32 2, %s18
      %p155 = scmp.lt.s32.totalorder %s17, 1
      %s156 = scalar_select %p155, %s17, 1
      %p157 = scmp.lt.s32.totalorder %s154, 1
      %s158 = scalar_select %p157, %s154, 1
      %s159 = smul.addr %s156, 2
      %s160 = sadd.s32 %s158, %s159
      %s161 = smul.addr %s160, 4
      %s162 = scalar_lea.vmem %s2, %s161
      %s163 = smul.u32 2, %s18
      %p164 = scmp.lt.s32.totalorder %s17, 1
      %s165 = scalar_select %p164, %s17, 1
      %p166 = scmp.lt.s32.totalorder %s163, 1
      %s167 = scalar_select %p166, %s163, 1
      %s168 = smul.addr %s165, 2
      %s169 = sadd.s32 %s167, %s168
      %s170 = smul.addr %s169, 4
      %s171 = scalar_lea.vmem %s1, %s170
      %s172 = smul.u32 2, %s18
      %s173 = smul.u32 2, %s18
      %p174 = scmp.lt.s32.totalorder %s17, 1
      %s175 = scalar_select %p174, %s17, 1
      %p176 = scmp.lt.s32.totalorder %s173, 1
      %s177 = scalar_select %p176, %s173, 1
      %s178 = smul.addr %s175, 2
      %s179 = sadd.s32 %s177, %s178
      %s180 = smul.addr %s179, 4
      %s181 = scalar_lea.vmem %s2, %s180
      %s182 = smul.u32 2, %s18
      %v184 = vld [vmem:[%s0] sm:$0x7]
      %v185 = vld [vmem:[%s171] sm:$0xff]
      %v187 = vcombine.high %v185, %v185
      %v189 = vpack.c.bf16 %v185, %v185
      %v190 = vpack.c.bf16 %v187, %v187
      %vm191 = vcmask 31744
      %v193 = vsel %vm191, %v184, 0
      %vm195 = vcmask 1041408
      %v197 = vsel %vm195, %v189, 0
      %v200 = vsel %vm195, %v190, 0
      %202 = vmatprep.subr.bf16.mxu0 0
      %203 = vmatpush1.bf16.msra.mxu0 0
      %204 = vmatprep.subr.bf16.mxu0 0
      %205 = vmatpush1.bf16.msra.mxu0 0
      %206 = vmatprep.subr.bf16.mxu0 0
      %207 = vmatpush1.bf16.msra.mxu0 0
      %208 = vmatprep.subr.bf16.mxu0 0
      %209 = vmatpush1.bf16.msra.mxu0 0
      %210 = vmatprep.subr.bf16.mxu0 0
      %211 = vmatpush1.bf16.msra.mxu0 0
      %212 = vmatprep.subr.bf16.mxu0 0
      %213 = vmatpush1.bf16.msra.mxu0 0
      %214 = vmatprep.subr.bf16.mxu0 0
      %215 = vmatpush1.bf16.msra.mxu0 0
      %216 = vmatprep.subr.bf16.mxu0 %v200
      %217 = vmatpush1.bf16.msra.mxu0 %v197
      %218 = vmatprep.subr.bf16.mxu0 0
      %219 = vmatpush2.bf16.msra.mxu0 0
      %220 = vmatprep.subr.bf16.mxu0 0
      %221 = vmatpush2.bf16.msra.mxu0 0
      %222 = vmatprep.subr.bf16.mxu0 0
      %223 = vmatpush2.bf16.msra.mxu0 0
      %224 = vmatprep.subr.bf16.mxu0 0
      %225 = vmatpush2.bf16.msra.mxu0 0
      %226 = vmatprep.subr.bf16.mxu0 0
      %227 = vmatpush2.bf16.msra.mxu0 0
      %228 = vmatprep.subr.bf16.mxu0 0
      %229 = vmatpush2.bf16.msra.mxu0 0
      %230 = vmatprep.subr.bf16.mxu0 0
      %231 = vmatpush2.bf16.msra.mxu0 0
      %232 = vmatprep.subr.bf16.mxu0 0
      %233 = vmatpush2.bf16.msra.mxu0 0
      %234 = vmatprep.mubr.bf16.mxu0 0
      %235 = vmatmul.mubr.bf16.gmra.mxu0 %v193
      %v236 = vpop.f32.mrf.mxu0
      %v237 = vadd.f32 0.0, %v236
      %v238 = vpop.f32.mrf.mxu0
      %v239 = vadd.f32 0.0, %v238
      %v240 = vpop.f32.mrf.mxu0
      %v241 = vpop.f32.mrf.mxu0
      %242 = vdwg.mxu0
      %v243 = vpack.c.bf16 %v237, %v237
      %v244 = vpack.c.bf16 %v239, %v239
      %v247 = vunpack.c.l.b16 %v243
      %v248 = vunpack.c.l.b16 %v244
      %v249 = vpack.c.b16 %v248, %v247
      %251 = vst [vmem:[%s181] sm:$0x77] %v249
      %s252 = smul.u32 2, %s18
      %p253 = scmp.lt.s32.totalorder %s17, 1
      %s254 = scalar_select %p253, %s17, 1
      %p255 = scmp.lt.s32.totalorder %s252, 1
      %s256 = scalar_select %p255, %s252, 1
      %s257 = smul.addr %s254, 2
      %s258 = sadd.s32 %s256, %s257
      %s259 = smul.addr %s258, 4
      %s260 = scalar_lea.vmem %s2, %s259
      // Predicated region
      $region29: #{non_local_block.2} parent=27 // pred_check
        %p261 = pneg %p94
      $region30: #{non_local_block.2} parent=27 // pred_check_branch
        %263 = sbr.rel (%p261) target = $region32
      $region31: #{non_local_block.2} parent=27 // pred_region
        %s264 = smul.u32 2, %s18
      $region32: #{non_local_block.2} parent=27 // pred_fallthru
        _
    $region28: #{non_local_block.2} parent=5 // pred_fallthru
      _
    %p265 = scmp.le.s32.totalorder 2, %s8
    // Predicated region
    $region33: #{non_local_block.2} parent=5 // pred_check
      %p266 = pneg %p265
    $region34: #{non_local_block.2} parent=5 // pred_check_branch
      %268 = sbr.rel (%p266) target = $region36
    $region35: #{non_local_block.2} parent=5 // pred_region
      %s269 = ssub.s32 %s8, 2
      // Predicated region
      $region37: #{non_local_block.2} parent=35 // pred_check
        %p270 = pneg %p100
      $region38: #{non_local_block.2} parent=35 // pred_check_branch
        %272 = sbr.rel (%p270) target = $region40
      $region39: #{non_local_block.2} parent=35 // pred_region
        %s273 = smul.u32 2, %s20
        %p274 = scmp.lt.s32.totalorder %s19, 1
        %s275 = scalar_select %p274, %s19, 1
        %p276 = scmp.lt.s32.totalorder %s273, 1
        %s277 = scalar_select %p276, %s273, 1
        %s278 = smul.addr %s275, 2
        %s279 = sadd.s32 %s277, %s278
        %s280 = smul.addr %s279, 4
        %s281 = scalar_lea.vmem %s2, %s280
      $region40: #{non_local_block.2} parent=35 // pred_fallthru
        _
    $region36: #{non_local_block.2} parent=5 // pred_fallthru
      _
  $region6: #{non_local_block.2} parent=0 // loop_footer
    %s12 = sadd.s32 1, %s8
  $region7: #{non_local_block.2} parent=0 // loop_footer_branch
    %7 = sbr.rel target = $region3
  $region8: #{non_local_block.2} parent=0 // loop_exit
    _

// kernel: non_local_block.3
$region0: #{non_local_block.3}
  #allocation0 [shape = 'u32[]', space=smem, size = 0x4, offset = 0x4, fixed_abs, tag = 'smem constant byte address 0x4 - core index']
  #allocation1 [shape = 'u32[144,128]{1,0:T(1,128)}', space=vmem, size = 0x12000, scoped, tag = 'internal scratch']
  #allocation2 [shape = 'f32[4,128]{1,0:T(4,128)}', space=vmem, size = 0x800, scoped, tag = 'scratch operand']
  %s0 = inlined_call_operand.vmem [shape: bf16[2,3,4,128], index: 0, kind: input, shape index: {}, may-alias: {0,1,2}]
  %s1 = inlined_call_operand.vmem [shape: bf16[2,3,4,128], index: 1, kind: input, shape index: {}, may-alias: {0,1,2}]
  %s2 = inlined_call_operand.vmem [shape: bf16[2,3,4,128], index: 2, kind: input, shape index: {}, may-alias: {0,1,2}]
  %s3 = inlined_call_operand.vmem [shape: bf16[2,4,4], index: 3, kind: input, shape index: {}]
  %s4 = inlined_call_operand.vmem [shape: f32[2,4,256], index: 4, kind: input, shape index: {}]
  %s5 = inlined_call_operand.vmem [shape: f32[2,4,256], index: 5, kind: output, shape index: {}]
  %s6 = sld [smem:[#allocation0]]
  $region61: #{non_local_block.3} parent=0
    _
  %s8 = ssub.s32 1, %s6
  %s9 = scalar_select 0, %s8, %s6
  loop: start=0, step=1, limit=4
  $region2: #{non_local_block.3} parent=0 // loop_pre_header
    _
  $region3: #{non_local_block.3} parent=0 // loop_header
    %s11 = sphi 0, %s15
    %p12 = scmp.ge.s32.totalorder %s11, 4
    %s18 = sphi 0, %s30
    %s19 = sphi 0, %s26
    %s20 = sphi 0, %s18
    %s21 = sphi 0, %s19
    %s22 = sphi 0, %s20
    %s23 = sphi 0, %s21
    %s33 = sphi 0, %s35
    %s36 = sphi 0, %s33
    %s37 = sphi 0, %s36
    %s53 = sphi 0, %s37
    %s61 = sphi 0, %s63
    %s64 = sphi 0, %s61
    %s65 = sphi 0, %s64
    %s81 = sphi 0, %s65
    %s89 = sphi 0, %s91
    %s92 = sphi 0, %s89
    %s93 = sphi 0, %s92
    %s109 = sphi 0, %s93
    %s113 = sphi 0, %s113
    %s115 = sphi 0, %s113
    %s116 = sphi 0, %s115
    %s130 = sphi 0, %s116
    %s136 = sphi 0, %s138
    %s139 = sphi 0, %s136
    %s140 = sphi 0, %s139
    %s156 = sphi 0, %s140
    %s162 = sphi 0, %s164
    %s165 = sphi 0, %s162
    %s166 = sphi 0, %s165
    %s182 = sphi 0, %s166
  $region4: #{non_local_block.3} parent=0 // loop_header_branch
    %14 = sbr.rel (%p12) target = $region8
  $region5: #{non_local_block.3} parent=0 // loop_body
    %s16 = ssub.s32 %s11, 1
    %s17 = ssub.s32 %s11, 2
    %s24 = sadd.s32 1, %s19
    %p25 = scmp.ge.s32.totalorder %s24, 1
    %s26 = scalar_select %p25, 0, %s24
    %s27 = sadd.s32 1, %s18
    %s28 = scalar_select %p25, %s27, %s18
    %p29 = scmp.ge.s32.totalorder %s28, 2
    %s30 = scalar_select %p29, 0, %s28
    %s31 = ssub.s32 %s18, %s30
    %p32 = scmp.eq.s32.totalorder %s31, 0
    %s34 = sadd.s32 %s33, 1
    %s35 = scalar_select %p32, %s33, %s34
    %p38 = pneg %p32
    %p39 = scmp.eq.s32.totalorder %s11, 1
    %p40 = por %p38, %p39
    %p41 = scmp.ne.s32.totalorder %s33, %s36
    %p42 = scmp.eq.s32.totalorder %s11, 0
    %p43 = por %p41, %p42
    %p44 = scmp.ne.s32.totalorder %s33, %s36
    %p45 = scmp.eq.s32.totalorder %s16, 1
    %p46 = por %p44, %p45
    %p47 = scmp.ne.s32.totalorder %s36, %s37
    %p48 = scmp.eq.s32.totalorder %s16, 0
    %p49 = por %p47, %p48
    %p50 = scmp.ne.s32.totalorder %s36, %s37
    %p51 = scmp.eq.s32.totalorder %s17, 1
    %p52 = por %p50, %p51
    %p54 = scmp.ne.s32.totalorder %s37, %s53
    %p55 = scmp.eq.s32.totalorder %s17, 0
    %p56 = por %p54, %p55
    %s57 = ssub.s32 %s18, %s30
    %s58 = ssub.s32 %s19, %s26
    %s59 = sor.u32 %s57, %s58
    %p60 = scmp.eq.s32.totalorder %s59, 0
    %s62 = sadd.s32 %s61, 1
    %s63 = scalar_select %p60, %s61, %s62
    %p66 = pneg %p60
    %p67 = scmp.eq.s32.totalorder %s11, 1
    %p68 = por %p66, %p67
    %p69 = scmp.ne.s32.totalorder %s61, %s64
    %p70 = scmp.eq.s32.totalorder %s11, 0
    %p71 = por %p69, %p70
    %p72 = scmp.ne.s32.totalorder %s61, %s64
    %p73 = scmp.eq.s32.totalorder %s16, 1
    %p74 = por %p72, %p73
    %p75 = scmp.ne.s32.totalorder %s64, %s65
    %p76 = scmp.eq.s32.totalorder %s16, 0
    %p77 = por %p75, %p76
    %p78 = scmp.ne.s32.totalorder %s64, %s65
    %p79 = scmp.eq.s32.totalorder %s17, 1
    %p80 = por %p78, %p79
    %p82 = scmp.ne.s32.totalorder %s65, %s81
    %p83 = scmp.eq.s32.totalorder %s17, 0
    %p84 = por %p82, %p83
    %s85 = ssub.s32 %s18, %s30
    %s86 = ssub.s32 %s19, %s26
    %s87 = sor.u32 %s85, %s86
    %p88 = scmp.eq.s32.totalorder %s87, 0
    %s90 = sadd.s32 %s89, 1
    %s91 = scalar_select %p88, %s89, %s90
    %p94 = pneg %p88
    %p95 = scmp.eq.s32.totalorder %s11, 1
    %p96 = por %p94, %p95
    %p97 = scmp.ne.s32.totalorder %s89, %s92
    %p98 = scmp.eq.s32.totalorder %s11, 0
    %p99 = por %p97, %p98
    %p100 = scmp.ne.s32.totalorder %s89, %s92
    %p101 = scmp.eq.s32.totalorder %s16, 1
    %p102 = por %p100, %p101
    %p103 = scmp.ne.s32.totalorder %s92, %s93
    %p104 = scmp.eq.s32.totalorder %s16, 0
    %p105 = por %p103, %p104
    %p106 = scmp.ne.s32.totalorder %s92, %s93
    %p107 = scmp.eq.s32.totalorder %s17, 1
    %p108 = por %p106, %p107
    %p110 = scmp.ne.s32.totalorder %s93, %s109
    %p111 = scmp.eq.s32.totalorder %s17, 0
    %p112 = por %p110, %p111
    %s114 = sadd.s32 %s113, 1
    %p117 = scmp.eq.s32.totalorder %s11, 1
    %p118 = scmp.ne.s32.totalorder %s113, %s115
    %p119 = scmp.eq.s32.totalorder %s11, 0
    %p120 = por %p118, %p119
    %p121 = scmp.ne.s32.totalorder %s113, %s115
    %p122 = scmp.eq.s32.totalorder %s16, 1
    %p123 = por %p121, %p122
    %p124 = scmp.ne.s32.totalorder %s115, %s116
    %p125 = scmp.eq.s32.totalorder %s16, 0
    %p126 = por %p124, %p125
    %p127 = scmp.ne.s32.totalorder %s115, %s116
    %p128 = scmp.eq.s32.totalorder %s17, 1
    %p129 = por %p127, %p128
    %p131 = scmp.ne.s32.totalorder %s116, %s130
    %p132 = scmp.eq.s32.totalorder %s17, 0
    %p133 = por %p131, %p132
    %s134 = ssub.s32 %s18, %s30
    %p135 = scmp.eq.s32.totalorder %s134, 0
    %s137 = sadd.s32 %s136, 1
    %s138 = scalar_select %p135, %s136, %s137
    %p141 = pneg %p135
    %p142 = scmp.eq.s32.totalorder %s11, 1
    %p143 = por %p141, %p142
    %p144 = scmp.ne.s32.totalorder %s136, %s139
    %p145 = scmp.eq.s32.totalorder %s11, 0
    %p146 = por %p144, %p145
    %p147 = scmp.ne.s32.totalorder %s136, %s139
    %p148 = scmp.eq.s32.totalorder %s16, 1
    %p149 = por %p147, %p148
    %p150 = scmp.ne.s32.totalorder %s139, %s140
    %p151 = scmp.eq.s32.totalorder %s16, 0
    %p152 = por %p150, %p151
    %p153 = scmp.ne.s32.totalorder %s139, %s140
    %p154 = scmp.eq.s32.totalorder %s17, 1
    %p155 = por %p153, %p154
    %p157 = scmp.ne.s32.totalorder %s140, %s156
    %p158 = scmp.eq.s32.totalorder %s17, 0
    %p159 = por %p157, %p158
    %s160 = ssub.s32 %s18, %s30
    %p161 = scmp.eq.s32.totalorder %s160, 0
    %s163 = sadd.s32 %s162, 1
    %s164 = scalar_select %p161, %s162, %s163
    %p167 = pneg %p161
    %p168 = scmp.eq.s32.totalorder %s11, 1
    %p169 = por %p167, %p168
    %p170 = scmp.ne.s32.totalorder %s162, %s165
    %p171 = scmp.eq.s32.totalorder %s11, 0
    %p172 = por %p170, %p171
    %p173 = scmp.ne.s32.totalorder %s162, %s165
    %p174 = scmp.eq.s32.totalorder %s16, 1
    %p175 = por %p173, %p174
    %p176 = scmp.ne.s32.totalorder %s165, %s166
    %p177 = scmp.eq.s32.totalorder %s16, 0
    %p178 = por %p176, %p177
    %p179 = scmp.ne.s32.totalorder %s165, %s166
    %p180 = scmp.eq.s32.totalorder %s17, 1
    %p181 = por %p179, %p180
    %p183 = scmp.ne.s32.totalorder %s166, %s182
    %p184 = scmp.eq.s32.totalorder %s17, 0
    %p185 = por %p183, %p184
    %p186 = scmp.le.s32.totalorder 1, %s11
    %p187 = scmp.lt.s32.totalorder %s11, 3
    %p188 = pnand %p186, %p187
    %p189 = pneg %p188
    // Predicated region
    $region9: #{non_local_block.3} parent=5 // pred_check
      _
    $region10: #{non_local_block.3} parent=5 // pred_check_branch
      %191 = sbr.rel (%p188) target = $region12
    $region11: #{non_local_block.3} parent=5 // pred_region
      %s192 = ssub.s32 %s11, 1
      // Predicated region
      $region13: #{non_local_block.3} parent=11 // pred_check
        %p193 = pneg %p126
      $region14: #{non_local_block.3} parent=11 // pred_check_branch
        %195 = sbr.rel (%p193) target = $region16
      $region15: #{non_local_block.3} parent=11 // pred_region
        _
      $region16: #{non_local_block.3} parent=11 // pred_fallthru
        _
    $region12: #{non_local_block.3} parent=5 // pred_fallthru
      _
    %p196 = scmp.lt.s32.totalorder %s11, 2
    // Predicated region
    $region17: #{non_local_block.3} parent=5 // pred_check
      %p197 = pneg %p196
    $region18: #{non_local_block.3} parent=5 // pred_check_branch
      %199 = sbr.rel (%p197) target = $region20
    $region19: #{non_local_block.3} parent=5 // pred_region
      // Predicated region
      $region21: #{non_local_block.3} parent=19 // pred_check
        %p200 = pneg %p43
      $region22: #{non_local_block.3} parent=19 // pred_check_branch
        %202 = sbr.rel (%p200) target = $region24
      $region23: #{non_local_block.3} parent=19 // pred_region
        %p203 = scmp.lt.s32.totalorder %s18, 1
        %s204 = scalar_select %p203, %s18, 1
        %s205 = smul.addr %s204, 3
        %s206 = sadd.s32 1, %s205
        %s207 = smul.addr %s206, 2
        %s208 = scalar_lea.vmem %s0, %s207
      $region24: #{non_local_block.3} parent=19 // pred_fallthru
        _
      // Predicated region
      $region25: #{non_local_block.3} parent=19 // pred_check
        %p209 = pneg %p71
      $region26: #{non_local_block.3} parent=19 // pred_check_branch
        %211 = sbr.rel (%p209) target = $region28
      $region27: #{non_local_block.3} parent=19 // pred_region
        %p212 = scmp.lt.s32.totalorder %s18, 1
        %s213 = scalar_select %p212, %s18, 1
        %p214 = scmp.lt.s32.totalorder %s19, 0
        %s215 = scalar_select %p214, %s19, 0
        %s216 = smul.addr %s213, 3
        %s217 = sadd.s32 %s215, %s216
        %s218 = smul.addr %s217, 2
        %s219 = scalar_lea.vmem %s1, %s218
      $region28: #{non_local_block.3} parent=19 // pred_fallthru
        _
      // Predicated region
      $region29: #{non_local_block.3} parent=19 // pred_check
        %p220 = pneg %p99
      $region30: #{non_local_block.3} parent=19 // pred_check_branch
        %222 = sbr.rel (%p220) target = $region32
      $region31: #{non_local_block.3} parent=19 // pred_region
        %p223 = scmp.lt.s32.totalorder %s18, 1
        %s224 = scalar_select %p223, %s18, 1
        %p225 = scmp.lt.s32.totalorder %s19, 0
        %s226 = scalar_select %p225, %s19, 0
        %s227 = sadd.s32 %s226, 2
        %s228 = smul.addr %s224, 3
        %s229 = sadd.s32 %s227, %s228
        %s230 = smul.addr %s229, 2
        %s231 = scalar_lea.vmem %s2, %s230
      $region32: #{non_local_block.3} parent=19 // pred_fallthru
        _
      // Predicated region
      $region33: #{non_local_block.3} parent=19 // pred_check
        %p232 = pneg %p146
      $region34: #{non_local_block.3} parent=19 // pred_check_branch
        %234 = sbr.rel (%p232) target = $region36
      $region35: #{non_local_block.3} parent=19 // pred_region
        %p235 = scmp.lt.s32.totalorder %s18, 1
        %s236 = scalar_select %p235, %s18, 1
        %s237 = smul.addr %s236, 2
        %s238 = smul.addr %s237, 4
        %s239 = scalar_lea.vmem %s4, %s238
      $region36: #{non_local_block.3} parent=19 // pred_fallthru
        _
    $region20: #{non_local_block.3} parent=5 // pred_fallthru
      _
    %p240 = scmp.le.s32.totalorder 1, %s11
    %p241 = scmp.lt.s32.totalorder %s11, 3
    %p242 = pnand %p240, %p241
    %p243 = pneg %p242
    // Predicated region
    $region37: #{non_local_block.3} parent=5 // pred_check
      _
    $region38: #{non_local_block.3} parent=5 // pred_check_branch
      %245 = sbr.rel (%p242) target = $region40
    $region39: #{non_local_block.3} parent=5 // pred_region
      %s246 = ssub.s32 %s11, 1
      %p247 = scmp.lt.s32.totalorder %s20, 1
      %s248 = scalar_select %p247, %s20, 1
      %s249 = smul.addr %s248, 3
      %s250 = sadd.s32 1, %s249
      %s251 = smul.addr %s250, 2
      %s252 = scalar_lea.vmem %s0, %s251
      %p253 = pneg %p49
      %p254 = pneg %p46
      %p255 = scmp.lt.s32.totalorder %s20, 1
      %s256 = scalar_select %p255, %s20, 1
      %p257 = scmp.lt.s32.totalorder %s21, 0
      %s258 = scalar_select %p257, %s21, 0
      %s259 = smul.addr %s256, 3
      %s260 = sadd.s32 %s258, %s259
      %s261 = smul.addr %s260, 2
      %s262 = scalar_lea.vmem %s1, %s261
      %p263 = pneg %p77
      %p264 = pneg %p74
      %p265 = scmp.lt.s32.totalorder %s20, 1
      %s266 = scalar_select %p265, %s20, 1
      %p267 = scmp.lt.s32.totalorder %s21, 0
      %s268 = scalar_select %p267, %s21, 0
      %s269 = sadd.s32 %s268, 2
      %s270 = smul.addr %s266, 3
      %s271 = sadd.s32 %s269, %s270
      %s272 = smul.addr %s271, 2
      %s273 = scalar_lea.vmem %s2, %s272
      %p274 = pneg %p105
      %p275 = pneg %p102
      %p276 = pneg %p126
      %p277 = pneg %p123
      %p278 = scmp.lt.s32.totalorder %s20, 1
      %s279 = scalar_select %p278, %s20, 1
      %s280 = smul.addr %s279, 2
      %s281 = smul.addr %s280, 4
      %s282 = scalar_lea.vmem %s4, %s281
      %p283 = pneg %p152
      %p284 = pneg %p149
      %p285 = pneg %p178
      %p286 = pneg %p175
      %p287 = scmp.lt.s32.totalorder %s20, 1
      %s288 = scalar_select %p287, %s20, 1
      %s289 = smul.addr %s288, 2
      %s290 = smul.addr %s289, 4
      %s291 = scalar_lea.vmem %s5, %s290
      %p292 = scmp.lt.s32.totalorder %s20, 1
      %s293 = scalar_select %p292, %s20, 1
      %s294 = smul.addr %s293, 3
      %s295 = sadd.s32 1, %s294
      %s296 = smul.addr %s295, 2
      %s297 = scalar_lea.vmem %s0, %s296
      %p298 = scmp.lt.s32.totalorder %s20, 1
      %s299 = scalar_select %p298, %s20, 1
      %p300 = scmp.lt.s32.totalorder %s21, 0
      %s301 = scalar_select %p300, %s21, 0
      %s302 = smul.addr %s299, 3
      %s303 = sadd.s32 %s301, %s302
      %s304 = smul.addr %s303, 2
      %s305 = scalar_lea.vmem %s1, %s304
      %p306 = scmp.lt.s32.totalorder %s20, 1
      %s307 = scalar_select %p306, %s20, 1
      %p308 = scmp.lt.s32.totalorder %s21, 0
      %s309 = scalar_select %p308, %s21, 0
      %s310 = sadd.s32 %s309, 2
      %s311 = smul.addr %s307, 3
      %s312 = sadd.s32 %s310, %s311
      %s313 = smul.addr %s312, 2
      %s314 = scalar_lea.vmem %s2, %s313
      %p315 = scmp.lt.s32.totalorder %s20, 1
      %s316 = scalar_select %p315, %s20, 1
      %s317 = smul.addr %s316, 2
      %s318 = smul.addr %s317, 4
      %s319 = scalar_lea.vmem %s4, %s318
      %p320 = scmp.lt.s32.totalorder %s20, 1
      %s321 = scalar_select %p320, %s20, 1
      %s322 = smul.addr %s321, 2
      %s323 = smul.addr %s322, 4
      %s324 = scalar_lea.vmem %s5, %s323
      %p326 = scmp.eq.s32.totalorder %s21, 0
      // Predicated region
      $region41: #{non_local_block.3} parent=39 // pred_check
        %p327 = pneg %p326
      $region42: #{non_local_block.3} parent=39 // pred_check_branch
        %329 = sbr.rel (%p327) target = $region44
      $region43: #{non_local_block.3} parent=39 // pred_region
        %330 = vst [vmem:[#allocation2] sm:$0xf] 0.0
      $region44: #{non_local_block.3} parent=39 // pred_fallthru
        _
      %v331 = vld [vmem:[%s297] sm:$0x3]
      %v332 = vld [vmem:[%s305] sm:$0x3]
      %v333 = vld [vmem:[%s314] sm:$0x3]
      %334 = vxpose.xlu0.c.b16.start [1/8] %v331, 128
      %335 = vxpose.xlu0.c.b16.cont [2/8] 0, 128
      %336 = vxpose.xlu0.c.b16.cont [3/8] 0, 128
      %337 = vxpose.xlu0.c.b16.cont [4/8] 0, 128
      %338 = vxpose.xlu0.c.b16.cont [5/8] 0, 128
      %339 = vxpose.xlu0.c.b16.cont [6/8] 0, 128
      %340 = vxpose.xlu0.c.b16.cont [7/8] 0, 128
      %341 = vxpose.xlu0.c.b16.end [8/8] 0, 128
      %v342 = vpop.trf.xlu0
      %v343 = vpop.trf.xlu0
      %v344 = vpop.trf.xlu0
      %v345 = vpop.trf.xlu0
      %v346 = vpop.trf.xlu0
      %v347 = vpop.trf.xlu0
      %v348 = vpop.trf.xlu0
      %v349 = vpop.trf.xlu0
      %vm350 = vcmask 31744
      %v352 = vsel %vm350, %v342, 0
      %v355 = vsel %vm350, %v343, 0
      %v358 = vsel %vm350, %v344, 0
      %v361 = vsel %vm350, %v345, 0
      %v364 = vsel %vm350, %v346, 0
      %v367 = vsel %vm350, %v347, 0
      %v370 = vsel %vm350, %v348, 0
      %v373 = vsel %vm350, %v349, 0
      %vm375 = vcmask 1041408
      %v377 = vsel %vm375, %v332, 0
      %379 = vmatprep.subr.bf16.mxu0 0
      %380 = vmatpush1.bf16.msra.mxu0 0
      %381 = vmatprep.subr.bf16.mxu0 0
      %382 = vmatpush1.bf16.msra.mxu0 0
      %383 = vmatprep.subr.bf16.mxu0 0
      %384 = vmatpush1.bf16.msra.mxu0 0
      %385 = vmatprep.subr.bf16.mxu0 0
      %386 = vmatpush1.bf16.msra.mxu0 0
      %387 = vmatprep.subr.bf16.mxu0 0
      %388 = vmatpush1.bf16.msra.mxu0 0
      %389 = vmatprep.subr.bf16.mxu0 0
      %390 = vmatpush1.bf16.msra.mxu0 0
      %391 = vmatprep.subr.bf16.mxu0 0
      %392 = vmatpush1.bf16.msra.mxu0 0
      %393 = vmatprep.subr.bf16.mxu0 0
      %394 = vmatpush1.bf16.msra.mxu0 %v377
      %395 = vmatprep.subr.bf16.mxu0 0
      %396 = vmatpush2.bf16.msra.mxu0 0
      %397 = vmatprep.subr.bf16.mxu0 0
      %398 = vmatpush2.bf16.msra.mxu0 0
      %399 = vmatprep.subr.bf16.mxu0 0
      %400 = vmatpush2.bf16.msra.mxu0 0
      %401 = vmatprep.subr.bf16.mxu0 0
      %402 = vmatpush2.bf16.msra.mxu0 0
      %403 = vmatprep.subr.bf16.mxu0 0
      %404 = vmatpush2.bf16.msra.mxu0 0
      %405 = vmatprep.subr.bf16.mxu0 0
      %406 = vmatpush2.bf16.msra.mxu0 0
      %407 = vmatprep.subr.bf16.mxu0 0
      %408 = vmatpush2.bf16.msra.mxu0 0
      %409 = vmatprep.subr.bf16.mxu0 0
      %410 = vmatpush2.bf16.msra.mxu0 0
      %411 = vmatprep.mubr.bf16.mxu0 0
      %412 = vmatmul.mubr.bf16.gmra.mxu0 %v352
      %v413 = vpop.f32.mrf.mxu0
      %v414 = vadd.f32 0.0, %v413
      %v415 = vpop.f32.mrf.mxu0
      %v416 = vpop.f32.mrf.mxu0
      %v417 = vadd.f32 0.0, %v416
      %v418 = vpop.f32.mrf.mxu0
      %419 = vmatprep.mubr.bf16.mxu0 0
      %420 = vmatmul.mubr.bf16.gmra.mxu0 %v355
      %v421 = vpop.f32.mrf.mxu0
      %v422 = vadd.f32 0.0, %v421
      %v423 = vpop.f32.mrf.mxu0
      %v424 = vpop.f32.mrf.mxu0
      %v425 = vadd.f32 0.0, %v424
      %v426 = vpop.f32.mrf.mxu0
      %427 = vmatprep.mubr.bf16.mxu0 0
      %428 = vmatmul.mubr.bf16.gmra.mxu0 %v358
      %v429 = vpop.f32.mrf.mxu0
      %v430 = vadd.f32 0.0, %v429
      %v431 = vpop.f32.mrf.mxu0
      %v432 = vpop.f32.mrf.mxu0
      %v433 = vadd.f32 0.0, %v432
      %v434 = vpop.f32.mrf.mxu0
      %435 = vmatprep.mubr.bf16.mxu0 0
      %436 = vmatmul.mubr.bf16.gmra.mxu0 %v361
      %v437 = vpop.f32.mrf.mxu0
      %v438 = vadd.f32 0.0, %v437
      %v439 = vpop.f32.mrf.mxu0
      %v440 = vpop.f32.mrf.mxu0
      %v441 = vadd.f32 0.0, %v440
      %v442 = vpop.f32.mrf.mxu0
      %443 = vmatprep.mubr.bf16.mxu0 0
      %444 = vmatmul.mubr.bf16.gmra.mxu0 %v364
      %v445 = vpop.f32.mrf.mxu0
      %v446 = vadd.f32 0.0, %v445
      %v447 = vpop.f32.mrf.mxu0
      %v448 = vpop.f32.mrf.mxu0
      %v449 = vadd.f32 0.0, %v448
      %v450 = vpop.f32.mrf.mxu0
      %451 = vmatprep.mubr.bf16.mxu0 0
      %452 = vmatmul.mubr.bf16.gmra.mxu0 %v367
      %v453 = vpop.f32.mrf.mxu0
      %v454 = vadd.f32 0.0, %v453
      %v455 = vpop.f32.mrf.mxu0
      %v456 = vpop.f32.mrf.mxu0
      %v457 = vadd.f32 0.0, %v456
      %v458 = vpop.f32.mrf.mxu0
      %459 = vmatprep.mubr.bf16.mxu0 0
      %460 = vmatmul.mubr.bf16.gmra.mxu0 %v370
      %v461 = vpop.f32.mrf.mxu0
      %v462 = vadd.f32 0.0, %v461
      %v463 = vpop.f32.mrf.mxu0
      %v464 = vpop.f32.mrf.mxu0
      %v465 = vadd.f32 0.0, %v464
      %v466 = vpop.f32.mrf.mxu0
      %467 = vmatprep.mubr.bf16.mxu0 0
      %468 = vmatmul.mubr.bf16.gmra.mxu0 %v373
      %v469 = vpop.f32.mrf.mxu0
      %v470 = vadd.f32 0.0, %v469
      %v471 = vpop.f32.mrf.mxu0
      %v472 = vpop.f32.mrf.mxu0
      %v473 = vadd.f32 0.0, %v472
      %v474 = vpop.f32.mrf.mxu0
      %475 = vdwg.mxu0
      %v476 = vmax.f32 %v414, %v430
      %v477 = vmax.f32 %v417, %v433
      %v478 = vmax.f32 %v422, %v438
      %v479 = vmax.f32 %v425, %v441
      %v480 = vmax.f32 %v476, %v446
      %v481 = vmax.f32 %v477, %v449
      %v482 = vmax.f32 %v478, %v454
      %v483 = vmax.f32 %v479, %v457
      %v484 = vmax.f32 %v480, %v462
      %v485 = vmax.f32 %v481, %v465
      %v486 = vmax.f32 %v482, %v470
      %v487 = vmax.f32 %v483, %v473
      %v488 = vmax.f32 %v484, %v485
      %v489 = vmax.f32 %v486, %v487
      %v490 = vmax.f32 %v488, %v489
      %v491 = vrot.slane %v490, 4
      %v492 = vmax.f32 %v490, %v491
      %v493 = vrot.slane %v492, 2
      %v494 = vmax.f32 %v492, %v493
      %v495 = vrot.slane %v494, 1
      %v496 = vmax.f32 %v494, %v495
      %v497 = vsub.f32 %v414, %v496
      %v498 = vsub.f32 %v417, %v496
      %v499 = vsub.f32 %v422, %v496
      %v500 = vsub.f32 %v425, %v496
      %v501 = vsub.f32 %v430, %v496
      %v502 = vsub.f32 %v433, %v496
      %v503 = vsub.f32 %v438, %v496
      %v504 = vsub.f32 %v441, %v496
      %v505 = vsub.f32 %v446, %v496
      %v506 = vsub.f32 %v449, %v496
      %v507 = vsub.f32 %v454, %v496
      %v508 = vsub.f32 %v457, %v496
      %v509 = vsub.f32 %v462, %v496
      %v510 = vsub.f32 %v465, %v496
      %v511 = vsub.f32 %v470, %v496
      %v512 = vsub.f32 %v473, %v496
      %v513 = vmul.f32 %v497, 1.442695
      %v514 = vpow.pop %v513
      %v515 = vmul.f32 %v498, 1.442695
      %v516 = vpow.pop %v515
      %v517 = vmul.f32 %v499, 1.442695
      %v518 = vpow.pop %v517
      %v519 = vmul.f32 %v500, 1.442695
      %v520 = vpow.pop %v519
      %v521 = vmul.f32 %v501, 1.442695
      %v522 = vpow.pop %v521
      %v523 = vmul.f32 %v502, 1.442695
      %v524 = vpow.pop %v523
      %v525 = vmul.f32 %v503, 1.442695
      %v526 = vpow.pop %v525
      %v527 = vmul.f32 %v504, 1.442695
      %v528 = vpow.pop %v527
      %v529 = vmul.f32 %v505, 1.442695
      %v530 = vpow.pop %v529
      %v531 = vmul.f32 %v506, 1.442695
      %v532 = vpow.pop %v531
      %v533 = vmul.f32 %v507, 1.442695
      %v534 = vpow.pop %v533
      %v535 = vmul.f32 %v508, 1.442695
      %v536 = vpow.pop %v535
      %v537 = vmul.f32 %v509, 1.442695
      %v538 = vpow.pop %v537
      %v539 = vmul.f32 %v510, 1.442695
      %v540 = vpow.pop %v539
      %v541 = vmul.f32 %v511, 1.442695
      %v542 = vpow.pop %v541
      %v543 = vmul.f32 %v512, 1.442695
      %v544 = vpow.pop %v543
      %v545 = vadd.f32 %v514, %v516
      %v546 = vadd.f32 %v545, %v518
      %v547 = vadd.f32 %v546, %v520
      %v548 = vadd.f32 %v547, %v522
      %v549 = vadd.f32 %v548, %v524
      %v550 = vadd.f32 %v549, %v526
      %v551 = vadd.f32 %v550, %v528
      %v552 = vadd.f32 %v551, %v530
      %v553 = vadd.f32 %v552, %v532
      %v554 = vadd.f32 %v553, %v534
      %v555 = vadd.f32 %v554, %v536
      %v556 = vadd.f32 %v555, %v538
      %v557 = vadd.f32 %v556, %v540
      %v558 = vadd.f32 %v557, %v542
      %v559 = vadd.f32 %v558, %v544
      %v560 = vrot.slane %v559, 4
      %v561 = vadd.f32 %v559, %v560
      %v562 = vrot.slane %v561, 2
      %v563 = vadd.f32 %v561, %v562
      %v564 = vrot.slane %v563, 1
      %v565 = vadd.f32 %v563, %v564
      %v566 = vrcp.pop %v565
      %v567 = vunpack.c.l.bf16 %v333
      %v568 = vmul.f32 %v567, %v566
      %v569 = vpack.c.bf16 %v568, %v568
      %v570 = vld [vmem:[#allocation2] sm:$0xf]
      %v571 = vpack.c.bf16 %v516, %v514
      %v572 = vpack.c.bf16 %v520, %v518
      %v573 = vpack.c.bf16 %v524, %v522
      %v574 = vpack.c.bf16 %v528, %v526
      %v575 = vpack.c.bf16 %v532, %v530
      %v576 = vpack.c.bf16 %v536, %v534
      %v577 = vpack.c.bf16 %v540, %v538
      %v578 = vpack.c.bf16 %v544, %v542
      %579 = vmatprep.subr.bf16.mxu0 0
      %580 = vmatpush1.bf16.xpose.msra.mxu0 %v578
      %581 = vmatprep.subr.bf16.mxu0 0
      %582 = vmatpush1.bf16.xpose.msra.mxu0 %v577
      %583 = vmatprep.subr.bf16.mxu0 0
      %584 = vmatpush1.bf16.xpose.msra.mxu0 %v576
      %585 = vmatprep.subr.bf16.mxu0 0
      %586 = vmatpush1.bf16.xpose.msra.mxu0 %v575
      %587 = vmatprep.subr.bf16.mxu0 0
      %588 = vmatpush1.bf16.xpose.msra.mxu0 %v574
      %589 = vmatprep.subr.bf16.mxu0 0
      %590 = vmatpush1.bf16.xpose.msra.mxu0 %v573
      %591 = vmatprep.subr.bf16.mxu0 0
      %592 = vmatpush1.bf16.xpose.msra.mxu0 %v572
      %593 = vmatprep.subr.bf16.mxu0 0
      %594 = vmatpush1.bf16.xpose.msra.mxu0 %v571
      %595 = vmatprep.subr.bf16.mxu0 0
      %596 = vmatpush2.bf16.xpose.msra.mxu0 0
      %597 = vmatprep.subr.bf16.mxu0 0
      %598 = vmatpush2.bf16.xpose.msra.mxu0 0
      %599 = vmatprep.subr.bf16.mxu0 0
      %600 = vmatpush2.bf16.xpose.msra.mxu0 0
      %601 = vmatprep.subr.bf16.mxu0 0
      %602 = vmatpush2.bf16.xpose.msra.mxu0 0
      %603 = vmatprep.subr.bf16.mxu0 0
      %604 = vmatpush2.bf16.xpose.msra.mxu0 0
      %605 = vmatprep.subr.bf16.mxu0 0
      %606 = vmatpush2.bf16.xpose.msra.mxu0 0
      %607 = vmatprep.subr.bf16.mxu0 0
      %608 = vmatpush2.bf16.xpose.msra.mxu0 0
      %609 = vmatprep.subr.bf16.mxu0 0
      %610 = vmatpush2.bf16.xpose.msra.mxu0 0
      %611 = vmatprep.mubr.bf16.mxu0 0
      %612 = vmatmul.mubr.bf16.gmra.mxu0 %v569
      %v613 = vpop.f32.mrf.mxu0
      %v614 = vadd.f32 0.0, %v613
      %v615 = vpop.f32.mrf.mxu0
      %v616 = vpop.f32.mrf.mxu0
      %v617 = vpop.f32.mrf.mxu0
      %618 = vdwg.mxu0
      %v619 = vadd.f32 %v570, %v614
      %620 = vst [vmem:[#allocation2] sm:$0xf] %v619
      // Predicated region
      $region45: #{non_local_block.3} parent=39 // pred_check
        %p621 = pneg %p326
      $region46: #{non_local_block.3} parent=39 // pred_check_branch
        %623 = sbr.rel (%p621) target = $region48
      $region47: #{non_local_block.3} parent=39 // pred_region
        %v624 = vld [vmem:[#allocation2] sm:$0xf]
        %v625 = vpack.c.bf16 %v624, %v624
        %v626 = vld [vmem:[%s3] sm:$0x3]
        %s627 = scalar_lea.vmem %s3, 2
        %v628 = vld [vmem:[%s627] sm:$0x3]
        %v629 = vld [vmem:[%s319] sm:$0xf]
        %v631 = vsel %vm350, %v626, 0
        %v634 = vsel %vm375, %v625, 0
        %636 = vmatprep.subr.bf16.mxu0 0
        %637 = vmatpush1.bf16.msra.mxu0 0
        %638 = vmatprep.subr.bf16.mxu0 0
        %639 = vmatpush1.bf16.msra.mxu0 0
        %640 = vmatprep.subr.bf16.mxu0 0
        %641 = vmatpush1.bf16.msra.mxu0 0
        %642 = vmatprep.subr.bf16.mxu0 0
        %643 = vmatpush1.bf16.msra.mxu0 0
        %644 = vmatprep.subr.bf16.mxu0 0
        %645 = vmatpush1.bf16.msra.mxu0 0
        %646 = vmatprep.subr.bf16.mxu0 0
        %647 = vmatpush1.bf16.msra.mxu0 0
        %648 = vmatprep.subr.bf16.mxu0 0
        %649 = vmatpush1.bf16.msra.mxu0 0
        %650 = vmatprep.subr.bf16.mxu0 0
        %651 = vmatpush1.bf16.msra.mxu0 %v634
        %652 = vmatprep.subr.bf16.mxu0 0
        %653 = vmatpush2.bf16.msra.mxu0 0
        %654 = vmatprep.subr.bf16.mxu0 0
        %655 = vmatpush2.bf16.msra.mxu0 0
        %656 = vmatprep.subr.bf16.mxu0 0
        %657 = vmatpush2.bf16.msra.mxu0 0
        %658 = vmatprep.subr.bf16.mxu0 0
        %659 = vmatpush2.bf16.msra.mxu0 0
        %660 = vmatprep.subr.bf16.mxu0 0
        %661 = vmatpush2.bf16.msra.mxu0 0
        %662 = vmatprep.subr.bf16.mxu0 0
        %663 = vmatpush2.bf16.msra.mxu0 0
        %664 = vmatprep.subr.bf16.mxu0 0
        %665 = vmatpush2.bf16.msra.mxu0 0
        %666 = vmatprep.subr.bf16.mxu0 0
        %667 = vmatpush2.bf16.msra.mxu0 0
        %668 = vmatprep.mubr.bf16.mxu0 0
        %669 = vmatmul.mubr.bf16.gmra.mxu0 %v631
        %v670 = vpop.f32.mrf.mxu0
        %v671 = vadd.f32 %v629, %v670
        %v672 = vpop.f32.mrf.mxu0
        %v673 = vpop.f32.mrf.mxu0
        %v674 = vpop.f32.mrf.mxu0
        %675 = vdwg.mxu0
        %676 = vst [vmem:[%s324] sm:$0xf] %v671
        %v677 = vld [vmem:[%s319 + $0x4] sm:$0xf]
        %v679 = vsel %vm350, %v628, 0
        %681 = vmatprep.subr.bf16.mxu0 0
        %682 = vmatpush1.bf16.msra.mxu0 0
        %683 = vmatprep.subr.bf16.mxu0 0
        %684 = vmatpush1.bf16.msra.mxu0 0
        %685 = vmatprep.subr.bf16.mxu0 0
        %686 = vmatpush1.bf16.msra.mxu0 0
        %687 = vmatprep.subr.bf16.mxu0 0
        %688 = vmatpush1.bf16.msra.mxu0 0
        %689 = vmatprep.subr.bf16.mxu0 0
        %690 = vmatpush1.bf16.msra.mxu0 0
        %691 = vmatprep.subr.bf16.mxu0 0
        %692 = vmatpush1.bf16.msra.mxu0 0
        %693 = vmatprep.subr.bf16.mxu0 0
        %694 = vmatpush1.bf16.msra.mxu0 0
        %695 = vmatprep.subr.bf16.mxu0 0
        %696 = vmatpush1.bf16.msra.mxu0 %v634
        %697 = vmatprep.subr.bf16.mxu0 0
        %698 = vmatpush2.bf16.msra.mxu0 0
        %699 = vmatprep.subr.bf16.mxu0 0
        %700 = vmatpush2.bf16.msra.mxu0 0
        %701 = vmatprep.subr.bf16.mxu0 0
        %702 = vmatpush2.bf16.msra.mxu0 0
        %703 = vmatprep.subr.bf16.mxu0 0
        %704 = vmatpush2.bf16.msra.mxu0 0
        %705 = vmatprep.subr.bf16.mxu0 0
        %706 = vmatpush2.bf16.msra.mxu0 0
        %707 = vmatprep.subr.bf16.mxu0 0
        %708 = vmatpush2.bf16.msra.mxu0 0
        %709 = vmatprep.subr.bf16.mxu0 0
        %710 = vmatpush2.bf16.msra.mxu0 0
        %711 = vmatprep.subr.bf16.mxu0 0
        %712 = vmatpush2.bf16.msra.mxu0 0
        %713 = vmatprep.mubr.bf16.mxu0 0
        %714 = vmatmul.mubr.bf16.gmra.mxu0 %v679
        %v715 = vpop.f32.mrf.mxu0
        %v716 = vadd.f32 %v677, %v715
        %v717 = vpop.f32.mrf.mxu0
        %v718 = vpop.f32.mrf.mxu0
        %v719 = vpop.f32.mrf.mxu0
        %720 = vdwg.mxu0
        %721 = vst [vmem:[%s324 + $0x4] sm:$0xf] %v716
      $region48: #{non_local_block.3} parent=39 // pred_fallthru
        _
      %p722 = scmp.lt.s32.totalorder %s20, 1
      %s723 = scalar_select %p722, %s20, 1
      %s724 = smul.addr %s723, 2
      %s725 = smul.addr %s724, 4
      %s726 = scalar_lea.vmem %s5, %s725
      // Predicated region
      $region49: #{non_local_block.3} parent=39 // pred_check
        %p727 = pneg %p175
      $region50: #{non_local_block.3} parent=39 // pred_check_branch
        %729 = sbr.rel (%p727) target = $region52
      $region51: #{non_local_block.3} parent=39 // pred_region
        _
      $region52: #{non_local_block.3} parent=39 // pred_fallthru
        _
    $region40: #{non_local_block.3} parent=5 // pred_fallthru
      _
    %p730 = scmp.le.s32.totalorder 2, %s11
    // Predicated region
    $region53: #{non_local_block.3} parent=5 // pred_check
      %p731 = pneg %p730
    $region54: #{non_local_block.3} parent=5 // pred_check_branch
      %733 = sbr.rel (%p731) target = $region56
    $region55: #{non_local_block.3} parent=5 // pred_region
      %s734 = ssub.s32 %s11, 2
      // Predicated region
      $region57: #{non_local_block.3} parent=55 // pred_check
        %p735 = pneg %p181
      $region58: #{non_local_block.3} parent=55 // pred_check_branch
        %737 = sbr.rel (%p735) target = $region60
      $region59: #{non_local_block.3} parent=55 // pred_region
        %p738 = scmp.lt.s32.totalorder %s22, 1
        %s739 = scalar_select %p738, %s22, 1
        %s740 = smul.addr %s739, 2
        %s741 = smul.addr %s740, 4
        %s742 = scalar_lea.vmem %s5, %s741
      $region60: #{non_local_block.3} parent=55 // pred_fallthru
        _
    $region56: #{non_local_block.3} parent=5 // pred_fallthru
      _
  $region6: #{non_local_block.3} parent=0 // loop_footer
    %s15 = sadd.s32 1, %s11
  $region7: #{non_local_block.3} parent=0 // loop_footer_branch
    %10 = sbr.rel target = $region3
  $region8: #{non_local_block.3} parent=0 // loop_exit
    _

</llo_original>
